<compile_context>
chip_gen: v7x
topology: tpu7x:2x2x1
jax: 0.10.0
libtpu: 0.0.40
codegen_flags: <defaults>
</compile_context>

<pallas_src>
import functools
import math

import jax
import jax.numpy as jnp
import numpy as np
from jax.experimental import pallas as pl
from jax.experimental.pallas import tpu as pltpu


def _round_up(x, m):
    return ((x + m - 1) // m) * m


def _dwconv_kernel(x_ref, p_ref, m_ref, o_ref, *, K, pad, W, HW, KK, chunk, num_chunks):
    """Depthwise conv on a lane-flattened image block.

    x_ref: (m_blk, HW)     one image per sublane row, flattened H*W on lanes
    p_ref: (m_blk, KK+1)   per-image taps (row-major ki,kj) + bias (last col), f32
    m_ref: (KK, HW)        per-tap zero-padding validity masks (0/1), f32
    o_ref: (m_blk, HW)     output in the same (input-sized) frame
    """
    masks = m_ref[...]                                         # (KK, HW), loaded once
    mask_rows = [masks[i:i + 1, :] for i in range(KK)]         # hoisted out of the loop

    def body(i, carry):
        start = pl.multiple_of(i * chunk, chunk)
        xc = x_ref[pl.ds(start, chunk), :].astype(jnp.float32)   # (chunk, HW)
        pc = p_ref[pl.ds(start, chunk), :].astype(jnp.float32)   # (chunk, KK+1)

        # K*K shifted MACs, fully vreg-resident: roll along the lane axis (XLU),
        # mask out positions that fall in the zero halo, scale by the per-image
        # tap (lane-broadcast of a per-sublane scalar), accumulate in f32 vregs.
        acc = None
        for idx in range(KK):
            ki, kj = divmod(idx, K)
            d = (ki - pad) * W + (kj - pad)
            shift = (-d) % HW
            xs = xc if shift == 0 else pltpu.roll(xc, shift=shift, axis=1)
            term = xs * mask_rows[idx] * pc[:, idx:idx + 1]
            acc = term if acc is None else acc + term
        acc = acc + pc[:, KK:KK + 1]                             # bias
        o_ref[pl.ds(start, chunk), :] = acc.astype(o_ref.dtype)  # single store pass
        return carry

    jax.lax.fori_loop(0, num_chunks, body, 0, unroll=(num_chunks <= 4))


def _vmem_caps():
    """Per-generation VMEM budget (block) and scoped limit."""
    try:
        cap = int(pltpu.get_tpu_info().vmem_capacity_bytes)
    except Exception:
        cap = 64 * 1024 * 1024          # conservative (v7x per-TC)
    block_budget = min(cap // 4, 32 * 1024 * 1024)   # v7x: 16 MiB, v5e/v6e: 32 MiB
    vmem_limit = min(cap // 2, 64 * 1024 * 1024)     # v7x: 32 MiB, v5e/v6e: 64 MiB
    return block_budget, vmem_limit


def _choose_blocking(M, HW, KK, itemsize, budget):
    """Images (sublane rows) per grid step, within the VMEM budget."""
    lanes = _round_up(HW, 128)
    # double-buffered input + output rows + params row; masks are a small constant
    per_row = 2 * (lanes * 2 * itemsize + _round_up(KK + 1, 128) * 4)
    const = 2 * _round_up(KK, 8) * lanes * 4
    max_rows = (budget - const) // per_row
    max_rows = max(8, min(8192, (max_rows // 8) * 8))

    if M <= max_rows:
        # Whole problem in one block (largest block = best for v5e/v6e).  Split
        # once for v7x's two TensorCores only when the block is large enough
        # that one extra grid step (~0.35us) is negligible; lane density is
        # unaffected by the split in this layout.
        if M % 16 == 0 and per_row * M >= (2 << 20):
            return M // 2
        return M

    # Largest divisor of M that is a multiple of 8 and fits the budget (no padding).
    best = 0
    i = 1
    while i * i <= M:
        if M % i == 0:
            for d in (i, M // i):
                if d % 8 == 0 and d <= max_rows and d > best:
                    best = d
        i += 1
    if best >= 8:
        return best
    # Fallback: pad the image count up to a multiple of the largest fitting block.
    return max_rows


def _choose_chunk(m_blk, lanes):
    """Sublane rows per inner-loop iteration (keep ~3 live f32 tiles in vregs)."""
    cap = (12288 // max(lanes, 1)) // 8 * 8
    cap = max(8, min(32, cap))
    for c in (32, 16, 8):
        if c <= cap and m_blk % c == 0:
            return c
    return m_blk


def synapse_depthwise_conv_bptt(x, weight, bias, *, kernel_size=3, stride=1, padding=1):
    """x: (T, B, C, H, W).  weight: (C, 1, K, K) PyTorch OIHW, groups=C.
    bias: (C,).  Returns (T, B, C, H_out, W_out)."""
    T, B, C, H, W = x.shape
    K = kernel_size
    KK = K * K
    H_out = (H + 2 * padding - K) // stride + 1
    W_out = (W + 2 * padding - K) // stride + 1
    if stride != 1 or H_out > H or W_out > W:
        # TODO(synk): general stride / "output larger than input" padding.
        raise NotImplementedError("only stride=1 with H_out<=H and W_out<=W is implemented")

    M = T * B * C
    HW = H * W
    itemsize = jnp.dtype(x.dtype).itemsize

    budget, vmem_limit = _vmem_caps()
    m_blk = _choose_blocking(M, HW, KK, itemsize, budget)
    lanes = _round_up(HW, 128)
    chunk = _choose_chunk(m_blk, lanes)
    num_chunks = m_blk // chunk

    M_pad = _round_up(M, m_blk)
    G = M_pad // m_blk

    # Free layout view: images on sublanes, flattened H*W on lanes.
    x_flat = x.reshape(M, HW)

    # Per-image taps + bias, tiled per channel (tiny: M x (K*K+1) f32).
    w_flat = weight.reshape(C, KK).astype(jnp.float32)
    params = jnp.concatenate([w_flat, bias.reshape(C, 1).astype(jnp.float32)], axis=1)
    params = jnp.tile(params, (T * B, 1))                       # (M, KK+1)

    # Per-tap validity masks implementing the zero halo (K*K x H*W f32).
    hh = np.arange(H).reshape(H, 1)
    ww = np.arange(W).reshape(1, W)
    rows = []
    for ki in range(K):
        for kj in range(K):
            valid = ((hh + ki - padding >= 0) & (hh + ki - padding < H)
                     & (ww + kj - padding >= 0) & (ww + kj - padding < W))
            rows.append(valid.reshape(-1))
    masks = jnp.asarray(np.stack(rows).astype(np.float32))      # (KK, HW)

    if M_pad != M:
        x_flat = jnp.pad(x_flat, ((0, M_pad - M), (0, 0)))
        params = jnp.pad(params, ((0, M_pad - M), (0, 0)))

    kernel = functools.partial(_dwconv_kernel, K=K, pad=padding, W=W, HW=HW,
                               KK=KK, chunk=chunk, num_chunks=num_chunks)

    flops = 2 * KK * M * HW
    bytes_accessed = int((x_flat.size + M_pad * HW) * itemsize
                         + params.size * 4 + masks.size * 4)

    out_flat = pl.pallas_call(
        kernel,
        out_shape=jax.ShapeDtypeStruct((M_pad, HW), x.dtype),
        grid_spec=pltpu.PrefetchScalarGridSpec(
            num_scalar_prefetch=0,
            grid=(G,),
            in_specs=[
                pl.BlockSpec((m_blk, HW), lambda g: (g, 0)),
                pl.BlockSpec((m_blk, KK + 1), lambda g: (g, 0)),
                pl.BlockSpec((KK, HW), lambda g: (0, 0)),       # constant: not re-DMA'd
            ],
            out_specs=pl.BlockSpec((m_blk, HW), lambda g: (g, 0)),
        ),
        compiler_params=pltpu.CompilerParams(
            dimension_semantics=("parallel",),                  # v7x: grid split across TCs
            vmem_limit_bytes=vmem_limit,
        ),
        cost_estimate=pl.CostEstimate(
            flops=flops, transcendentals=0, bytes_accessed=bytes_accessed),
    )(x_flat, params, masks)

    if M_pad != M:
        out_flat = out_flat[:M]
    out = out_flat.reshape(T, B, C, H, W)
    if (H_out, W_out) != (H, W):
        out = out[..., :H_out, :W_out]
    return out


if __name__ == "__main__":
    # Small shapes consistent with the module: TIME=8, batch=2, channels=4, spatial=16.
    T, B, C, H, W = 8, 2, 4, 16, 16
    K, stride, padding = 3, 1, 1

    key = jax.random.PRNGKey(0)
    k_x, k_w, k_b = jax.random.split(key, 3)

    x = jax.random.normal(k_x, (T, B, C, H, W), dtype=jnp.float32)

    # Weight init matching __init__: N(0, sqrt(2/(K*K*C))); bias nonzero to
    # exercise the bias path.
    n_fan = K * K * C
    weight = jax.random.normal(k_w, (C, 1, K, K), dtype=jnp.float32) * math.sqrt(2.0 / n_fan)
    bias = jax.random.normal(k_b, (C,), dtype=jnp.float32) * 0.1

    out = synapse_depthwise_conv_bptt(x, weight, bias,
                                      kernel_size=K, stride=stride, padding=padding)
    out = jax.block_until_ready(out)

    H_out = (H + 2 * padding - K) // stride + 1
    W_out = (W + 2 * padding - K) // stride + 1

    # Reference: lax depthwise conv (NCHW, groups=C).
    ref = jax.lax.conv_general_dilated(
        x.reshape(T * B, C, H, W), weight,
        window_strides=(stride, stride),
        padding=((padding, padding), (padding, padding)),
        feature_group_count=C,
        dimension_numbers=("NCHW", "OIHW", "NCHW"),
    ) + bias[None, :, None, None]
    ref = ref.reshape(T, B, C, H_out, W_out)

    assert out.shape == (T, B, C, H_out, W_out), out.shape
    err = float(jnp.max(jnp.abs(out - ref)))
    assert jnp.allclose(out, ref, rtol=1e-5, atol=1e-5), err
    print("KERNEL_OK")
</pallas_src>

<mosaic_0001>
module attributes {stable_mosaic.version = 11 : i64} {
  func.func @_dwconv_kernel(%arg0: i32, %arg1: memref<64x256xf32, #tpu.memory_space<vmem>>, %arg2: memref<64x10xf32, #tpu.memory_space<vmem>>, %arg3: memref<9x256xf32, #tpu.memory_space<vmem>>, %arg4: memref<64x256xf32, #tpu.memory_space<vmem>>) attributes {dimension_semantics = [#tpu.dimension_semantics<parallel>], iteration_bounds = array<i64: 1>, scalar_prefetch = 0 : i64, scratch_operands = 0 : i64, tpu.core_type = #tpu.core_type<tc>, window_params = [{transform_indices = @transform_0, window_bounds = array<i64: 64, 256>}, {transform_indices = @transform_1, window_bounds = array<i64: 64, 10>}, {pipeline_mode = #tpu.pipeline_mode<synchronous>, transform_indices = @transform_2, window_bounds = array<i64: 9, 256>}, {transform_indices = @transform_3, window_bounds = array<i64: 64, 256>}]} {
    %c0 = arith.constant 0 : index
    %c0_0 = arith.constant 0 : index
    %0 = vector.load %arg3[%c0, %c0_0] : memref<9x256xf32, #tpu.memory_space<vmem>>, vector<9x256xf32>
    %1 = vector.extract_strided_slice %0 {offsets = [0, 0], sizes = [1, 256], strides = [1, 1]} : vector<9x256xf32> to vector<1x256xf32>
    %2 = vector.extract_strided_slice %0 {offsets = [1, 0], sizes = [1, 256], strides = [1, 1]} : vector<9x256xf32> to vector<1x256xf32>
    %3 = vector.extract_strided_slice %0 {offsets = [2, 0], sizes = [1, 256], strides = [1, 1]} : vector<9x256xf32> to vector<1x256xf32>
    %4 = vector.extract_strided_slice %0 {offsets = [3, 0], sizes = [1, 256], strides = [1, 1]} : vector<9x256xf32> to vector<1x256xf32>
    %5 = vector.extract_strided_slice %0 {offsets = [4, 0], sizes = [1, 256], strides = [1, 1]} : vector<9x256xf32> to vector<1x256xf32>
    %6 = vector.extract_strided_slice %0 {offsets = [5, 0], sizes = [1, 256], strides = [1, 1]} : vector<9x256xf32> to vector<1x256xf32>
    %7 = vector.extract_strided_slice %0 {offsets = [6, 0], sizes = [1, 256], strides = [1, 1]} : vector<9x256xf32> to vector<1x256xf32>
    %8 = vector.extract_strided_slice %0 {offsets = [7, 0], sizes = [1, 256], strides = [1, 1]} : vector<9x256xf32> to vector<1x256xf32>
    %9 = vector.extract_strided_slice %0 {offsets = [8, 0], sizes = [1, 256], strides = [1, 1]} : vector<9x256xf32> to vector<1x256xf32>
    %c0_i32 = arith.constant 0 : i32
    %c32_i32 = arith.constant 32 : i32
    %10 = arith.muli %c0_i32, %c32_i32 : i32
    %11 = tpu.assume_multiple %10, 32 : i32
    %12 = arith.index_cast %11 : i32 to index
    %c0_1 = arith.constant 0 : index
    %13 = vector.load %arg1[%12, %c0_1] : memref<64x256xf32, #tpu.memory_space<vmem>>, vector<32x256xf32>
    %14 = arith.index_cast %11 : i32 to index
    %c0_2 = arith.constant 0 : index
    %15 = vector.load %arg2[%14, %c0_2] : memref<64x10xf32, #tpu.memory_space<vmem>>, vector<32x10xf32>
    %c17_i32 = arith.constant 17 : i32
    %16 = tpu.dynamic_rotate %13 by %c17_i32 dim 1 : vector<32x256xf32>, i32 -> vector<32x256xf32>
    %17 = vector.broadcast %1 : vector<1x256xf32> to vector<32x256xf32>
    %18 = arith.mulf %16, %17 : vector<32x256xf32>
    %19 = vector.extract_strided_slice %15 {offsets = [0, 0], sizes = [32, 1], strides = [1, 1]} : vector<32x10xf32> to vector<32x1xf32>
    %20 = vector.broadcast %19 : vector<32x1xf32> to vector<32x256xf32>
    %21 = arith.mulf %18, %20 : vector<32x256xf32>
    %c16_i32 = arith.constant 16 : i32
    %22 = tpu.dynamic_rotate %13 by %c16_i32 dim 1 : vector<32x256xf32>, i32 -> vector<32x256xf32>
    %23 = vector.broadcast %2 : vector<1x256xf32> to vector<32x256xf32>
    %24 = arith.mulf %22, %23 : vector<32x256xf32>
    %25 = vector.extract_strided_slice %15 {offsets = [0, 1], sizes = [32, 1], strides = [1, 1]} : vector<32x10xf32> to vector<32x1xf32>
    %26 = vector.broadcast %25 : vector<32x1xf32> to vector<32x256xf32>
    %27 = arith.mulf %24, %26 : vector<32x256xf32>
    %28 = arith.addf %21, %27 : vector<32x256xf32>
    %c15_i32 = arith.constant 15 : i32
    %29 = tpu.dynamic_rotate %13 by %c15_i32 dim 1 : vector<32x256xf32>, i32 -> vector<32x256xf32>
    %30 = vector.broadcast %3 : vector<1x256xf32> to vector<32x256xf32>
    %31 = arith.mulf %29, %30 : vector<32x256xf32>
    %32 = vector.extract_strided_slice %15 {offsets = [0, 2], sizes = [32, 1], strides = [1, 1]} : vector<32x10xf32> to vector<32x1xf32>
    %33 = vector.broadcast %32 : vector<32x1xf32> to vector<32x256xf32>
    %34 = arith.mulf %31, %33 : vector<32x256xf32>
    %35 = arith.addf %28, %34 : vector<32x256xf32>
    %c1_i32 = arith.constant 1 : i32
    %36 = tpu.dynamic_rotate %13 by %c1_i32 dim 1 : vector<32x256xf32>, i32 -> vector<32x256xf32>
    %37 = vector.broadcast %4 : vector<1x256xf32> to vector<32x256xf32>
    %38 = arith.mulf %36, %37 : vector<32x256xf32>
    %39 = vector.extract_strided_slice %15 {offsets = [0, 3], sizes = [32, 1], strides = [1, 1]} : vector<32x10xf32> to vector<32x1xf32>
    %40 = vector.broadcast %39 : vector<32x1xf32> to vector<32x256xf32>
    %41 = arith.mulf %38, %40 : vector<32x256xf32>
    %42 = arith.addf %35, %41 : vector<32x256xf32>
    %43 = vector.broadcast %5 : vector<1x256xf32> to vector<32x256xf32>
    %44 = arith.mulf %13, %43 : vector<32x256xf32>
    %45 = vector.extract_strided_slice %15 {offsets = [0, 4], sizes = [32, 1], strides = [1, 1]} : vector<32x10xf32> to vector<32x1xf32>
    %46 = vector.broadcast %45 : vector<32x1xf32> to vector<32x256xf32>
    %47 = arith.mulf %44, %46 : vector<32x256xf32>
    %48 = arith.addf %42, %47 : vector<32x256xf32>
    %c255_i32 = arith.constant 255 : i32
    %49 = tpu.dynamic_rotate %13 by %c255_i32 dim 1 : vector<32x256xf32>, i32 -> vector<32x256xf32>
    %50 = vector.broadcast %6 : vector<1x256xf32> to vector<32x256xf32>
    %51 = arith.mulf %49, %50 : vector<32x256xf32>
    %52 = vector.extract_strided_slice %15 {offsets = [0, 5], sizes = [32, 1], strides = [1, 1]} : vector<32x10xf32> to vector<32x1xf32>
    %53 = vector.broadcast %52 : vector<32x1xf32> to vector<32x256xf32>
    %54 = arith.mulf %51, %53 : vector<32x256xf32>
    %55 = arith.addf %48, %54 : vector<32x256xf32>
    %c241_i32 = arith.constant 241 : i32
    %56 = tpu.dynamic_rotate %13 by %c241_i32 dim 1 : vector<32x256xf32>, i32 -> vector<32x256xf32>
    %57 = vector.broadcast %7 : vector<1x256xf32> to vector<32x256xf32>
    %58 = arith.mulf %56, %57 : vector<32x256xf32>
    %59 = vector.extract_strided_slice %15 {offsets = [0, 6], sizes = [32, 1], strides = [1, 1]} : vector<32x10xf32> to vector<32x1xf32>
    %60 = vector.broadcast %59 : vector<32x1xf32> to vector<32x256xf32>
    %61 = arith.mulf %58, %60 : vector<32x256xf32>
    %62 = arith.addf %55, %61 : vector<32x256xf32>
    %c240_i32 = arith.constant 240 : i32
    %63 = tpu.dynamic_rotate %13 by %c240_i32 dim 1 : vector<32x256xf32>, i32 -> vector<32x256xf32>
    %64 = vector.broadcast %8 : vector<1x256xf32> to vector<32x256xf32>
    %65 = arith.mulf %63, %64 : vector<32x256xf32>
    %66 = vector.extract_strided_slice %15 {offsets = [0, 7], sizes = [32, 1], strides = [1, 1]} : vector<32x10xf32> to vector<32x1xf32>
    %67 = vector.broadcast %66 : vector<32x1xf32> to vector<32x256xf32>
    %68 = arith.mulf %65, %67 : vector<32x256xf32>
    %69 = arith.addf %62, %68 : vector<32x256xf32>
    %c239_i32 = arith.constant 239 : i32
    %70 = tpu.dynamic_rotate %13 by %c239_i32 dim 1 : vector<32x256xf32>, i32 -> vector<32x256xf32>
    %71 = vector.broadcast %9 : vector<1x256xf32> to vector<32x256xf32>
    %72 = arith.mulf %70, %71 : vector<32x256xf32>
    %73 = vector.extract_strided_slice %15 {offsets = [0, 8], sizes = [32, 1], strides = [1, 1]} : vector<32x10xf32> to vector<32x1xf32>
    %74 = vector.broadcast %73 : vector<32x1xf32> to vector<32x256xf32>
    %75 = arith.mulf %72, %74 : vector<32x256xf32>
    %76 = arith.addf %69, %75 : vector<32x256xf32>
    %77 = vector.extract_strided_slice %15 {offsets = [0, 9], sizes = [32, 1], strides = [1, 1]} : vector<32x10xf32> to vector<32x1xf32>
    %78 = vector.broadcast %77 : vector<32x1xf32> to vector<32x256xf32>
    %79 = arith.addf %76, %78 : vector<32x256xf32>
    %80 = arith.index_cast %11 : i32 to index
    %c0_3 = arith.constant 0 : index
    %81 = vector.load %arg4[%80, %c0_3] : memref<64x256xf32, #tpu.memory_space<vmem>>, vector<32x256xf32>
    tpu.vector_store %arg4[%80, %c0_3], %79 {strides = array<i32>} : memref<64x256xf32, #tpu.memory_space<vmem>>, vector<32x256xf32>,
    %c1_i32_4 = arith.constant 1 : i32
    %c32_i32_5 = arith.constant 32 : i32
    %82 = arith.muli %c1_i32_4, %c32_i32_5 : i32
    %83 = tpu.assume_multiple %82, 32 : i32
    %84 = arith.index_cast %83 : i32 to index
    %c0_6 = arith.constant 0 : index
    %85 = vector.load %arg1[%84, %c0_6] : memref<64x256xf32, #tpu.memory_space<vmem>>, vector<32x256xf32>
    %86 = arith.index_cast %83 : i32 to index
    %c0_7 = arith.constant 0 : index
    %87 = vector.load %arg2[%86, %c0_7] : memref<64x10xf32, #tpu.memory_space<vmem>>, vector<32x10xf32>
    %c17_i32_8 = arith.constant 17 : i32
    %88 = tpu.dynamic_rotate %85 by %c17_i32_8 dim 1 : vector<32x256xf32>, i32 -> vector<32x256xf32>
    %89 = vector.broadcast %1 : vector<1x256xf32> to vector<32x256xf32>
    %90 = arith.mulf %88, %89 : vector<32x256xf32>
    %91 = vector.extract_strided_slice %87 {offsets = [0, 0], sizes = [32, 1], strides = [1, 1]} : vector<32x10xf32> to vector<32x1xf32>
    %92 = vector.broadcast %91 : vector<32x1xf32> to vector<32x256xf32>
    %93 = arith.mulf %90, %92 : vector<32x256xf32>
    %c16_i32_9 = arith.constant 16 : i32
    %94 = tpu.dynamic_rotate %85 by %c16_i32_9 dim 1 : vector<32x256xf32>, i32 -> vector<32x256xf32>
    %95 = vector.broadcast %2 : vector<1x256xf32> to vector<32x256xf32>
    %96 = arith.mulf %94, %95 : vector<32x256xf32>
    %97 = vector.extract_strided_slice %87 {offsets = [0, 1], sizes = [32, 1], strides = [1, 1]} : vector<32x10xf32> to vector<32x1xf32>
    %98 = vector.broadcast %97 : vector<32x1xf32> to vector<32x256xf32>
    %99 = arith.mulf %96, %98 : vector<32x256xf32>
    %100 = arith.addf %93, %99 : vector<32x256xf32>
    %c15_i32_10 = arith.constant 15 : i32
    %101 = tpu.dynamic_rotate %85 by %c15_i32_10 dim 1 : vector<32x256xf32>, i32 -> vector<32x256xf32>
    %102 = vector.broadcast %3 : vector<1x256xf32> to vector<32x256xf32>
    %103 = arith.mulf %101, %102 : vector<32x256xf32>
    %104 = vector.extract_strided_slice %87 {offsets = [0, 2], sizes = [32, 1], strides = [1, 1]} : vector<32x10xf32> to vector<32x1xf32>
    %105 = vector.broadcast %104 : vector<32x1xf32> to vector<32x256xf32>
    %106 = arith.mulf %103, %105 : vector<32x256xf32>
    %107 = arith.addf %100, %106 : vector<32x256xf32>
    %c1_i32_11 = arith.constant 1 : i32
    %108 = tpu.dynamic_rotate %85 by %c1_i32_11 dim 1 : vector<32x256xf32>, i32 -> vector<32x256xf32>
    %109 = vector.broadcast %4 : vector<1x256xf32> to vector<32x256xf32>
    %110 = arith.mulf %108, %109 : vector<32x256xf32>
    %111 = vector.extract_strided_slice %87 {offsets = [0, 3], sizes = [32, 1], strides = [1, 1]} : vector<32x10xf32> to vector<32x1xf32>
    %112 = vector.broadcast %111 : vector<32x1xf32> to vector<32x256xf32>
    %113 = arith.mulf %110, %112 : vector<32x256xf32>
    %114 = arith.addf %107, %113 : vector<32x256xf32>
    %115 = vector.broadcast %5 : vector<1x256xf32> to vector<32x256xf32>
    %116 = arith.mulf %85, %115 : vector<32x256xf32>
    %117 = vector.extract_strided_slice %87 {offsets = [0, 4], sizes = [32, 1], strides = [1, 1]} : vector<32x10xf32> to vector<32x1xf32>
    %118 = vector.broadcast %117 : vector<32x1xf32> to vector<32x256xf32>
    %119 = arith.mulf %116, %118 : vector<32x256xf32>
    %120 = arith.addf %114, %119 : vector<32x256xf32>
    %c255_i32_12 = arith.constant 255 : i32
    %121 = tpu.dynamic_rotate %85 by %c255_i32_12 dim 1 : vector<32x256xf32>, i32 -> vector<32x256xf32>
    %122 = vector.broadcast %6 : vector<1x256xf32> to vector<32x256xf32>
    %123 = arith.mulf %121, %122 : vector<32x256xf32>
    %124 = vector.extract_strided_slice %87 {offsets = [0, 5], sizes = [32, 1], strides = [1, 1]} : vector<32x10xf32> to vector<32x1xf32>
    %125 = vector.broadcast %124 : vector<32x1xf32> to vector<32x256xf32>
    %126 = arith.mulf %123, %125 : vector<32x256xf32>
    %127 = arith.addf %120, %126 : vector<32x256xf32>
    %c241_i32_13 = arith.constant 241 : i32
    %128 = tpu.dynamic_rotate %85 by %c241_i32_13 dim 1 : vector<32x256xf32>, i32 -> vector<32x256xf32>
    %129 = vector.broadcast %7 : vector<1x256xf32> to vector<32x256xf32>
    %130 = arith.mulf %128, %129 : vector<32x256xf32>
    %131 = vector.extract_strided_slice %87 {offsets = [0, 6], sizes = [32, 1], strides = [1, 1]} : vector<32x10xf32> to vector<32x1xf32>
    %132 = vector.broadcast %131 : vector<32x1xf32> to vector<32x256xf32>
    %133 = arith.mulf %130, %132 : vector<32x256xf32>
    %134 = arith.addf %127, %133 : vector<32x256xf32>
    %c240_i32_14 = arith.constant 240 : i32
    %135 = tpu.dynamic_rotate %85 by %c240_i32_14 dim 1 : vector<32x256xf32>, i32 -> vector<32x256xf32>
    %136 = vector.broadcast %8 : vector<1x256xf32> to vector<32x256xf32>
    %137 = arith.mulf %135, %136 : vector<32x256xf32>
    %138 = vector.extract_strided_slice %87 {offsets = [0, 7], sizes = [32, 1], strides = [1, 1]} : vector<32x10xf32> to vector<32x1xf32>
    %139 = vector.broadcast %138 : vector<32x1xf32> to vector<32x256xf32>
    %140 = arith.mulf %137, %139 : vector<32x256xf32>
    %141 = arith.addf %134, %140 : vector<32x256xf32>
    %c239_i32_15 = arith.constant 239 : i32
    %142 = tpu.dynamic_rotate %85 by %c239_i32_15 dim 1 : vector<32x256xf32>, i32 -> vector<32x256xf32>
    %143 = vector.broadcast %9 : vector<1x256xf32> to vector<32x256xf32>
    %144 = arith.mulf %142, %143 : vector<32x256xf32>
    %145 = vector.extract_strided_slice %87 {offsets = [0, 8], sizes = [32, 1], strides = [1, 1]} : vector<32x10xf32> to vector<32x1xf32>
    %146 = vector.broadcast %145 : vector<32x1xf32> to vector<32x256xf32>
    %147 = arith.mulf %144, %146 : vector<32x256xf32>
    %148 = arith.addf %141, %147 : vector<32x256xf32>
    %149 = vector.extract_strided_slice %87 {offsets = [0, 9], sizes = [32, 1], strides = [1, 1]} : vector<32x10xf32> to vector<32x1xf32>
    %150 = vector.broadcast %149 : vector<32x1xf32> to vector<32x256xf32>
    %151 = arith.addf %148, %150 : vector<32x256xf32>
    %152 = arith.index_cast %83 : i32 to index
    %c0_16 = arith.constant 0 : index
    %153 = vector.load %arg4[%152, %c0_16] : memref<64x256xf32, #tpu.memory_space<vmem>>, vector<32x256xf32>
    tpu.vector_store %arg4[%152, %c0_16], %151 {strides = array<i32>} : memref<64x256xf32, #tpu.memory_space<vmem>>, vector<32x256xf32>,
    %c2_i32 = arith.constant 2 : i32
    return
  }
  func.func @transform_0(%arg0: i32) -> (i32, i32) {
    %c0_i32 = arith.constant 0 : i32
    %c0_i32_0 = arith.constant 0 : i32
    return %arg0, %c0_i32 : i32, i32
  }
  func.func @transform_1(%arg0: i32) -> (i32, i32) {
    %c0_i32 = arith.constant 0 : i32
    %c0_i32_0 = arith.constant 0 : i32
    return %arg0, %c0_i32 : i32, i32
  }
  func.func @transform_2(%arg0: i32) -> (i32, i32) {
    %c0_i32 = arith.constant 0 : i32
    %c0_i32_0 = arith.constant 0 : i32
    %c0_i32_1 = arith.constant 0 : i32
    return %c0_i32, %c0_i32_0 : i32, i32
  }
  func.func @transform_3(%arg0: i32) -> (i32, i32) {
    %c0_i32 = arith.constant 0 : i32
    %c0_i32_0 = arith.constant 0 : i32
    return %arg0, %c0_i32 : i32, i32
  }
}

</mosaic_0001>

<llo_original>
// kernel: tpu_custom_call.1
$region0: #{tpu_custom_call.1}
  #allocation0 [shape = 'u32[]', space=smem, size = 0x4, offset = 0x4, fixed_abs, tag = 'smem constant byte address 0x4 - core index']
  #allocation1 [shape = 'u32[144,128]{1,0:T(1,128)}', space=vmem, size = 0x12000, scoped, tag = 'internal scratch']
  %s0 = inlined_call_operand.hbm [shape: f32[64,256], index: 0, kind: input, shape index: {}]
  %s1 = inlined_call_operand.vmem [shape: f32[64,10], index: 1, kind: input, shape index: {}]
  %s2 = inlined_call_operand.vmem [shape: f32[9,256], index: 2, kind: input, shape index: {}]
  %s3 = inlined_call_operand.hbm [shape: f32[64,256], index: 3, kind: output, shape index: {}]
  %s4 = sld [smem:[#allocation0]]
  $region26: #{tpu_custom_call.1} parent=0
    _
  %s6 = ssub.s32 1, %s4
  %s7 = scalar_select 0, %s6, %s4
  $region1: #{tpu_custom_call.1} parent=0
    #allocation2 [shape = 'u8[65536]{0}', space=vmem, size = 0x10000, scoped, tag = 'input window, operand 0, single buffered']
    #allocation3 [shape = 's32[1]{0}', space=sflag, size = 0x4, scoped, tag = 'scoped memory for tpu_custom_call.1']
    #allocation4 [shape = 's32[1]{0}', space=sflag, size = 0x4, scoped, tag = 'scoped memory for tpu_custom_call.1']
    #allocation5 [shape = 'u8[65536]{0}', space=vmem, size = 0x10000, scoped, tag = 'output window, operand 0, single buffered']
    %8 = vsyncpa [#allocation3], 0
    %9 = vsyncpa [#allocation4], 0
    // Predicated region
    $region2: #{tpu_custom_call.1} parent=1 // pred_check
      _
    $region3: #{tpu_custom_call.1} parent=1 // pred_check_branch
      %11 = sbr.rel (0) target = $region5
    $region4: #{tpu_custom_call.1} parent=1 // pred_region
      %s13 = ssub.s32 2048, 2048
      %14 = vsyncadd [#allocation3], %s13
      %s15 = sshll.u32 [#allocation2], 4
      %s16 = int_to_ptr.vmem [resolvable:$true] %s15
      %21 = dma.hbm_to_vmem [thread:$0]  %s0, 2048, %s16, [#allocation3], 256, 256, 16
    $region5: #{tpu_custom_call.1} parent=1 // pred_fallthru
      _
    // Predicated region
    $region6: #{tpu_custom_call.1} parent=1 // pred_check
      _
    $region7: #{tpu_custom_call.1} parent=1 // pred_check_branch
      %23 = sbr.rel (0) target = $region9
    $region8: #{tpu_custom_call.1} parent=1 // pred_region
      _
    $region9: #{tpu_custom_call.1} parent=1 // pred_fallthru
      _
    // Predicated region
    $region10: #{tpu_custom_call.1} parent=1 // pred_check
      _
    $region11: #{tpu_custom_call.1} parent=1 // pred_check_branch
      %25 = sbr.rel (0) target = $region13
    $region12: #{tpu_custom_call.1} parent=1 // pred_region
      _
    $region13: #{tpu_custom_call.1} parent=1 // pred_fallthru
      _
    // Predicated region
    $region14: #{tpu_custom_call.1} parent=1 // pred_check
      _
    $region15: #{tpu_custom_call.1} parent=1 // pred_check_branch
      %27 = sbr.rel (0) target = $region17
    $region16: #{tpu_custom_call.1} parent=1 // pred_region
      %28 = dma.done [#allocation3], 2048
    $region17: #{tpu_custom_call.1} parent=1 // pred_fallthru
      _
    %v29 = vld [vmem:[%s2] sm:$0xff]
    %v30 = vld [vmem:[%s2 + $0x8] sm:$0xff]
    %v31 = vld [vmem:[%s2 + $0x10] sm:$0x1]
    %v32 = vld [vmem:[%s2 + $0x18] sm:$0x1]
    %s33 = smul.u32 0, 2
    %s34 = smul.addr %s33, 8
    %s35 = scalar_lea.vmem [#allocation2], %s34
    %v36 = vld [vmem:[%s35] sm:$0xff]
    %v37 = vld [vmem:[%s35 + $0x8] sm:$0xff]
    %v38 = vld [vmem:[%s35 + $0x10] sm:$0xff]
    %v39 = vld [vmem:[%s35 + $0x18] sm:$0xff]
    %v40 = vld [vmem:[%s35 + $0x20] sm:$0xff]
    %v41 = vld [vmem:[%s35 + $0x28] sm:$0xff]
    %v42 = vld [vmem:[%s35 + $0x30] sm:$0xff]
    %v43 = vld [vmem:[%s35 + $0x38] sm:$0xff]
    %v44 = vld [vmem:[%s1] sm:$0xff]
    %v45 = vld [vmem:[%s1 + $0x8] sm:$0xff]
    %v46 = vld [vmem:[%s1 + $0x10] sm:$0xff]
    %v47 = vld [vmem:[%s1 + $0x18] sm:$0xff]
    %48 = vrot.lane.b32.xlu0 %v36, 17
    %v49 = vpop.permute.xlu0 %48
    %50 = vrot.lane.b32.xlu0 %v38, 17
    %v51 = vpop.permute.xlu0 %50
    %52 = vrot.lane.b32.xlu0 %v40, 17
    %v53 = vpop.permute.xlu0 %52
    %54 = vrot.lane.b32.xlu0 %v42, 17
    %v55 = vpop.permute.xlu0 %54
    %56 = vrot.lane.b32.xlu0 %v37, 17
    %v57 = vpop.permute.xlu0 %56
    %58 = vrot.lane.b32.xlu0 %v39, 17
    %v59 = vpop.permute.xlu0 %58
    %60 = vrot.lane.b32.xlu0 %v41, 17
    %v61 = vpop.permute.xlu0 %60
    %62 = vrot.lane.b32.xlu0 %v43, 17
    %v63 = vpop.permute.xlu0 %62
    %v64 = vlaneseq
    %v65 = vand.u32 %v64, 127
    %vm66 = vcmp.lt.s32.totalorder %v65, 17
    %v67 = vsel %vm66, %v49, %v57
    %v68 = vsel %vm66, %v51, %v59
    %v69 = vsel %vm66, %v53, %v61
    %v70 = vsel %vm66, %v55, %v63
    %v71 = vsel %vm66, %v57, %v49
    %v72 = vsel %vm66, %v59, %v51
    %v73 = vsel %vm66, %v61, %v53
    %v74 = vsel %vm66, %v63, %v55
    %v75 = vlaneseq
    %v76 = vshrl.u32 %v75, 7
    %v77 = vsub.s32 0, %v76
    %v78 = vrot.slane %v29, %v77
    %v79 = vlaneseq
    %v80 = vshrl.u32 %v79, 7
    %v81 = vsub.s32 0, %v80
    %v82 = vrot.slane %v30, %v81
    %v83 = vmul.f32 %v71, %v78
    %v84 = vmul.f32 %v67, %v82
    %v85 = vmul.f32 %v72, %v78
    %v86 = vmul.f32 %v68, %v82
    %v87 = vmul.f32 %v73, %v78
    %v88 = vmul.f32 %v69, %v82
    %v89 = vmul.f32 %v74, %v78
    %v90 = vmul.f32 %v70, %v82
    %92 = vset.pattern.permute.xlu0 0
    %93 = vperm.xlu0 %92, %v44
    %v94 = vpop.permute.xlu0 %93
    %97 = vset.pattern.permute.xlu0 0
    %98 = vperm.xlu0 %97, %v45
    %v99 = vpop.permute.xlu0 %98
    %102 = vset.pattern.permute.xlu0 0
    %103 = vperm.xlu0 %102, %v46
    %v104 = vpop.permute.xlu0 %103
    %107 = vset.pattern.permute.xlu0 0
    %108 = vperm.xlu0 %107, %v47
    %v109 = vpop.permute.xlu0 %108
    %v111 = vmul.f32 %v83, %v94
    %v112 = vmul.f32 %v84, %v94
    %v113 = vmul.f32 %v85, %v99
    %v114 = vmul.f32 %v86, %v99
    %v115 = vmul.f32 %v87, %v104
    %v116 = vmul.f32 %v88, %v104
    %v117 = vmul.f32 %v89, %v109
    %v118 = vmul.f32 %v90, %v109
    %119 = vrot.lane.b32.xlu0 %v36, 16
    %v120 = vpop.permute.xlu0 %119
    %121 = vrot.lane.b32.xlu0 %v38, 16
    %v122 = vpop.permute.xlu0 %121
    %123 = vrot.lane.b32.xlu0 %v40, 16
    %v124 = vpop.permute.xlu0 %123
    %125 = vrot.lane.b32.xlu0 %v42, 16
    %v126 = vpop.permute.xlu0 %125
    %127 = vrot.lane.b32.xlu0 %v37, 16
    %v128 = vpop.permute.xlu0 %127
    %129 = vrot.lane.b32.xlu0 %v39, 16
    %v130 = vpop.permute.xlu0 %129
    %131 = vrot.lane.b32.xlu0 %v41, 16
    %v132 = vpop.permute.xlu0 %131
    %133 = vrot.lane.b32.xlu0 %v43, 16
    %v134 = vpop.permute.xlu0 %133
    %vm135 = vcmp.lt.s32.totalorder %v65, 16
    %v136 = vsel %vm135, %v120, %v128
    %v137 = vsel %vm135, %v122, %v130
    %v138 = vsel %vm135, %v124, %v132
    %v139 = vsel %vm135, %v126, %v134
    %v140 = vsel %vm135, %v128, %v120
    %v141 = vsel %vm135, %v130, %v122
    %v142 = vsel %vm135, %v132, %v124
    %v143 = vsel %vm135, %v134, %v126
    %v144 = vlaneseq
    %v145 = vshrl.u32 %v144, 7
    %v146 = vsub.s32 1, %v145
    %v147 = vrot.slane %v29, %v146
    %v148 = vlaneseq
    %v149 = vshrl.u32 %v148, 7
    %v150 = vsub.s32 1, %v149
    %v151 = vrot.slane %v30, %v150
    %v152 = vmul.f32 %v140, %v147
    %v153 = vmul.f32 %v136, %v151
    %v154 = vmul.f32 %v141, %v147
    %v155 = vmul.f32 %v137, %v151
    %v156 = vmul.f32 %v142, %v147
    %v157 = vmul.f32 %v138, %v151
    %v158 = vmul.f32 %v143, %v147
    %v159 = vmul.f32 %v139, %v151
    %160 = vset.pattern.permute.xlu0 1
    %161 = vperm.xlu0 %160, %v44
    %v162 = vpop.permute.xlu0 %161
    %164 = vset.pattern.permute.xlu0 1
    %165 = vperm.xlu0 %164, %v45
    %v166 = vpop.permute.xlu0 %165
    %168 = vset.pattern.permute.xlu0 1
    %169 = vperm.xlu0 %168, %v46
    %v170 = vpop.permute.xlu0 %169
    %172 = vset.pattern.permute.xlu0 1
    %173 = vperm.xlu0 %172, %v47
    %v174 = vpop.permute.xlu0 %173
    %v176 = vmul.f32 %v152, %v162
    %v177 = vmul.f32 %v153, %v162
    %v178 = vmul.f32 %v154, %v166
    %v179 = vmul.f32 %v155, %v166
    %v180 = vmul.f32 %v156, %v170
    %v181 = vmul.f32 %v157, %v170
    %v182 = vmul.f32 %v158, %v174
    %v183 = vmul.f32 %v159, %v174
    %v184 = vadd.f32 %v111, %v176
    %v185 = vadd.f32 %v112, %v177
    %v186 = vadd.f32 %v113, %v178
    %v187 = vadd.f32 %v114, %v179
    %v188 = vadd.f32 %v115, %v180
    %v189 = vadd.f32 %v116, %v181
    %v190 = vadd.f32 %v117, %v182
    %v191 = vadd.f32 %v118, %v183
    %192 = vrot.lane.b32.xlu0 %v36, 15
    %v193 = vpop.permute.xlu0 %192
    %194 = vrot.lane.b32.xlu0 %v38, 15
    %v195 = vpop.permute.xlu0 %194
    %196 = vrot.lane.b32.xlu0 %v40, 15
    %v197 = vpop.permute.xlu0 %196
    %198 = vrot.lane.b32.xlu0 %v42, 15
    %v199 = vpop.permute.xlu0 %198
    %200 = vrot.lane.b32.xlu0 %v37, 15
    %v201 = vpop.permute.xlu0 %200
    %202 = vrot.lane.b32.xlu0 %v39, 15
    %v203 = vpop.permute.xlu0 %202
    %204 = vrot.lane.b32.xlu0 %v41, 15
    %v205 = vpop.permute.xlu0 %204
    %206 = vrot.lane.b32.xlu0 %v43, 15
    %v207 = vpop.permute.xlu0 %206
    %vm208 = vcmp.lt.s32.totalorder %v65, 15
    %v209 = vsel %vm208, %v193, %v201
    %v210 = vsel %vm208, %v195, %v203
    %v211 = vsel %vm208, %v197, %v205
    %v212 = vsel %vm208, %v199, %v207
    %v213 = vsel %vm208, %v201, %v193
    %v214 = vsel %vm208, %v203, %v195
    %v215 = vsel %vm208, %v205, %v197
    %v216 = vsel %vm208, %v207, %v199
    %v217 = vlaneseq
    %v218 = vshrl.u32 %v217, 7
    %v219 = vsub.s32 2, %v218
    %v220 = vrot.slane %v29, %v219
    %v221 = vlaneseq
    %v222 = vshrl.u32 %v221, 7
    %v223 = vsub.s32 2, %v222
    %v224 = vrot.slane %v30, %v223
    %v225 = vmul.f32 %v213, %v220
    %v226 = vmul.f32 %v209, %v224
    %v227 = vmul.f32 %v214, %v220
    %v228 = vmul.f32 %v210, %v224
    %v229 = vmul.f32 %v215, %v220
    %v230 = vmul.f32 %v211, %v224
    %v231 = vmul.f32 %v216, %v220
    %v232 = vmul.f32 %v212, %v224
    %233 = vset.pattern.permute.xlu0 2
    %234 = vperm.xlu0 %233, %v44
    %v235 = vpop.permute.xlu0 %234
    %237 = vset.pattern.permute.xlu0 2
    %238 = vperm.xlu0 %237, %v45
    %v239 = vpop.permute.xlu0 %238
    %241 = vset.pattern.permute.xlu0 2
    %242 = vperm.xlu0 %241, %v46
    %v243 = vpop.permute.xlu0 %242
    %245 = vset.pattern.permute.xlu0 2
    %246 = vperm.xlu0 %245, %v47
    %v247 = vpop.permute.xlu0 %246
    %v249 = vmul.f32 %v225, %v235
    %v250 = vmul.f32 %v226, %v235
    %v251 = vmul.f32 %v227, %v239
    %v252 = vmul.f32 %v228, %v239
    %v253 = vmul.f32 %v229, %v243
    %v254 = vmul.f32 %v230, %v243
    %v255 = vmul.f32 %v231, %v247
    %v256 = vmul.f32 %v232, %v247
    %v257 = vadd.f32 %v184, %v249
    %v258 = vadd.f32 %v185, %v250
    %v259 = vadd.f32 %v186, %v251
    %v260 = vadd.f32 %v187, %v252
    %v261 = vadd.f32 %v188, %v253
    %v262 = vadd.f32 %v189, %v254
    %v263 = vadd.f32 %v190, %v255
    %v264 = vadd.f32 %v191, %v256
    %265 = vrot.lane.b32.xlu0 %v36, 1
    %v266 = vpop.permute.xlu0 %265
    %267 = vrot.lane.b32.xlu0 %v38, 1
    %v268 = vpop.permute.xlu0 %267
    %269 = vrot.lane.b32.xlu0 %v40, 1
    %v270 = vpop.permute.xlu0 %269
    %271 = vrot.lane.b32.xlu0 %v42, 1
    %v272 = vpop.permute.xlu0 %271
    %273 = vrot.lane.b32.xlu0 %v37, 1
    %v274 = vpop.permute.xlu0 %273
    %275 = vrot.lane.b32.xlu0 %v39, 1
    %v276 = vpop.permute.xlu0 %275
    %277 = vrot.lane.b32.xlu0 %v41, 1
    %v278 = vpop.permute.xlu0 %277
    %279 = vrot.lane.b32.xlu0 %v43, 1
    %v280 = vpop.permute.xlu0 %279
    %vm281 = vcmp.lt.s32.totalorder %v65, 1
    %v282 = vsel %vm281, %v266, %v274
    %v283 = vsel %vm281, %v268, %v276
    %v284 = vsel %vm281, %v270, %v278
    %v285 = vsel %vm281, %v272, %v280
    %v286 = vsel %vm281, %v274, %v266
    %v287 = vsel %vm281, %v276, %v268
    %v288 = vsel %vm281, %v278, %v270
    %v289 = vsel %vm281, %v280, %v272
    %v290 = vlaneseq
    %v291 = vshrl.u32 %v290, 7
    %v292 = vsub.s32 3, %v291
    %v293 = vrot.slane %v29, %v292
    %v294 = vlaneseq
    %v295 = vshrl.u32 %v294, 7
    %v296 = vsub.s32 3, %v295
    %v297 = vrot.slane %v30, %v296
    %v298 = vmul.f32 %v286, %v293
    %v299 = vmul.f32 %v282, %v297
    %v300 = vmul.f32 %v287, %v293
    %v301 = vmul.f32 %v283, %v297
    %v302 = vmul.f32 %v288, %v293
    %v303 = vmul.f32 %v284, %v297
    %v304 = vmul.f32 %v289, %v293
    %v305 = vmul.f32 %v285, %v297
    %306 = vset.pattern.permute.xlu0 3
    %307 = vperm.xlu0 %306, %v44
    %v308 = vpop.permute.xlu0 %307
    %310 = vset.pattern.permute.xlu0 3
    %311 = vperm.xlu0 %310, %v45
    %v312 = vpop.permute.xlu0 %311
    %314 = vset.pattern.permute.xlu0 3
    %315 = vperm.xlu0 %314, %v46
    %v316 = vpop.permute.xlu0 %315
    %318 = vset.pattern.permute.xlu0 3
    %319 = vperm.xlu0 %318, %v47
    %v320 = vpop.permute.xlu0 %319
    %v322 = vmul.f32 %v298, %v308
    %v323 = vmul.f32 %v299, %v308
    %v324 = vmul.f32 %v300, %v312
    %v325 = vmul.f32 %v301, %v312
    %v326 = vmul.f32 %v302, %v316
    %v327 = vmul.f32 %v303, %v316
    %v328 = vmul.f32 %v304, %v320
    %v329 = vmul.f32 %v305, %v320
    %v330 = vadd.f32 %v257, %v322
    %v331 = vadd.f32 %v258, %v323
    %v332 = vadd.f32 %v259, %v324
    %v333 = vadd.f32 %v260, %v325
    %v334 = vadd.f32 %v261, %v326
    %v335 = vadd.f32 %v262, %v327
    %v336 = vadd.f32 %v263, %v328
    %v337 = vadd.f32 %v264, %v329
    %v338 = vlaneseq
    %v339 = vshrl.u32 %v338, 7
    %v340 = vsub.s32 4, %v339
    %v341 = vrot.slane %v29, %v340
    %v342 = vlaneseq
    %v343 = vshrl.u32 %v342, 7
    %v344 = vsub.s32 4, %v343
    %v345 = vrot.slane %v30, %v344
    %v346 = vmul.f32 %v36, %v341
    %v347 = vmul.f32 %v37, %v345
    %v348 = vmul.f32 %v38, %v341
    %v349 = vmul.f32 %v39, %v345
    %v350 = vmul.f32 %v40, %v341
    %v351 = vmul.f32 %v41, %v345
    %v352 = vmul.f32 %v42, %v341
    %v353 = vmul.f32 %v43, %v345
    %354 = vset.pattern.permute.xlu0 4
    %355 = vperm.xlu0 %354, %v44
    %v356 = vpop.permute.xlu0 %355
    %358 = vset.pattern.permute.xlu0 4
    %359 = vperm.xlu0 %358, %v45
    %v360 = vpop.permute.xlu0 %359
    %362 = vset.pattern.permute.xlu0 4
    %363 = vperm.xlu0 %362, %v46
    %v364 = vpop.permute.xlu0 %363
    %366 = vset.pattern.permute.xlu0 4
    %367 = vperm.xlu0 %366, %v47
    %v368 = vpop.permute.xlu0 %367
    %v370 = vmul.f32 %v346, %v356
    %v371 = vmul.f32 %v347, %v356
    %v372 = vmul.f32 %v348, %v360
    %v373 = vmul.f32 %v349, %v360
    %v374 = vmul.f32 %v350, %v364
    %v375 = vmul.f32 %v351, %v364
    %v376 = vmul.f32 %v352, %v368
    %v377 = vmul.f32 %v353, %v368
    %v378 = vadd.f32 %v330, %v370
    %v379 = vadd.f32 %v331, %v371
    %v380 = vadd.f32 %v332, %v372
    %v381 = vadd.f32 %v333, %v373
    %v382 = vadd.f32 %v334, %v374
    %v383 = vadd.f32 %v335, %v375
    %v384 = vadd.f32 %v336, %v376
    %v385 = vadd.f32 %v337, %v377
    %386 = vrot.lane.b32.xlu0 %v36, 127
    %v387 = vpop.permute.xlu0 %386
    %388 = vrot.lane.b32.xlu0 %v38, 127
    %v389 = vpop.permute.xlu0 %388
    %390 = vrot.lane.b32.xlu0 %v40, 127
    %v391 = vpop.permute.xlu0 %390
    %392 = vrot.lane.b32.xlu0 %v42, 127
    %v393 = vpop.permute.xlu0 %392
    %394 = vrot.lane.b32.xlu0 %v37, 127
    %v395 = vpop.permute.xlu0 %394
    %396 = vrot.lane.b32.xlu0 %v39, 127
    %v397 = vpop.permute.xlu0 %396
    %398 = vrot.lane.b32.xlu0 %v41, 127
    %v399 = vpop.permute.xlu0 %398
    %400 = vrot.lane.b32.xlu0 %v43, 127
    %v401 = vpop.permute.xlu0 %400
    %vm402 = vcmp.lt.s32.totalorder %v65, 127
    %v403 = vsel %vm402, %v387, %v395
    %v404 = vsel %vm402, %v389, %v397
    %v405 = vsel %vm402, %v391, %v399
    %v406 = vsel %vm402, %v393, %v401
    %v407 = vsel %vm402, %v395, %v387
    %v408 = vsel %vm402, %v397, %v389
    %v409 = vsel %vm402, %v399, %v391
    %v410 = vsel %vm402, %v401, %v393
    %v411 = vlaneseq
    %v412 = vshrl.u32 %v411, 7
    %v413 = vsub.s32 5, %v412
    %v414 = vrot.slane %v29, %v413
    %v415 = vlaneseq
    %v416 = vshrl.u32 %v415, 7
    %v417 = vsub.s32 5, %v416
    %v418 = vrot.slane %v30, %v417
    %v419 = vmul.f32 %v403, %v414
    %v420 = vmul.f32 %v407, %v418
    %v421 = vmul.f32 %v404, %v414
    %v422 = vmul.f32 %v408, %v418
    %v423 = vmul.f32 %v405, %v414
    %v424 = vmul.f32 %v409, %v418
    %v425 = vmul.f32 %v406, %v414
    %v426 = vmul.f32 %v410, %v418
    %427 = vset.pattern.permute.xlu0 5
    %428 = vperm.xlu0 %427, %v44
    %v429 = vpop.permute.xlu0 %428
    %431 = vset.pattern.permute.xlu0 5
    %432 = vperm.xlu0 %431, %v45
    %v433 = vpop.permute.xlu0 %432
    %435 = vset.pattern.permute.xlu0 5
    %436 = vperm.xlu0 %435, %v46
    %v437 = vpop.permute.xlu0 %436
    %439 = vset.pattern.permute.xlu0 5
    %440 = vperm.xlu0 %439, %v47
    %v441 = vpop.permute.xlu0 %440
    %v443 = vmul.f32 %v419, %v429
    %v444 = vmul.f32 %v420, %v429
    %v445 = vmul.f32 %v421, %v433
    %v446 = vmul.f32 %v422, %v433
    %v447 = vmul.f32 %v423, %v437
    %v448 = vmul.f32 %v424, %v437
    %v449 = vmul.f32 %v425, %v441
    %v450 = vmul.f32 %v426, %v441
    %v451 = vadd.f32 %v378, %v443
    %v452 = vadd.f32 %v379, %v444
    %v453 = vadd.f32 %v380, %v445
    %v454 = vadd.f32 %v381, %v446
    %v455 = vadd.f32 %v382, %v447
    %v456 = vadd.f32 %v383, %v448
    %v457 = vadd.f32 %v384, %v449
    %v458 = vadd.f32 %v385, %v450
    %459 = vrot.lane.b32.xlu0 %v36, 113
    %v460 = vpop.permute.xlu0 %459
    %461 = vrot.lane.b32.xlu0 %v38, 113
    %v462 = vpop.permute.xlu0 %461
    %463 = vrot.lane.b32.xlu0 %v40, 113
    %v464 = vpop.permute.xlu0 %463
    %465 = vrot.lane.b32.xlu0 %v42, 113
    %v466 = vpop.permute.xlu0 %465
    %467 = vrot.lane.b32.xlu0 %v37, 113
    %v468 = vpop.permute.xlu0 %467
    %469 = vrot.lane.b32.xlu0 %v39, 113
    %v470 = vpop.permute.xlu0 %469
    %471 = vrot.lane.b32.xlu0 %v41, 113
    %v472 = vpop.permute.xlu0 %471
    %473 = vrot.lane.b32.xlu0 %v43, 113
    %v474 = vpop.permute.xlu0 %473
    %vm475 = vcmp.lt.s32.totalorder %v65, 113
    %v476 = vsel %vm475, %v460, %v468
    %v477 = vsel %vm475, %v462, %v470
    %v478 = vsel %vm475, %v464, %v472
    %v479 = vsel %vm475, %v466, %v474
    %v480 = vsel %vm475, %v468, %v460
    %v481 = vsel %vm475, %v470, %v462
    %v482 = vsel %vm475, %v472, %v464
    %v483 = vsel %vm475, %v474, %v466
    %v484 = vlaneseq
    %v485 = vshrl.u32 %v484, 7
    %v486 = vsub.s32 6, %v485
    %v487 = vrot.slane %v29, %v486
    %v488 = vlaneseq
    %v489 = vshrl.u32 %v488, 7
    %v490 = vsub.s32 6, %v489
    %v491 = vrot.slane %v30, %v490
    %v492 = vmul.f32 %v476, %v487
    %v493 = vmul.f32 %v480, %v491
    %v494 = vmul.f32 %v477, %v487
    %v495 = vmul.f32 %v481, %v491
    %v496 = vmul.f32 %v478, %v487
    %v497 = vmul.f32 %v482, %v491
    %v498 = vmul.f32 %v479, %v487
    %v499 = vmul.f32 %v483, %v491
    %500 = vset.pattern.permute.xlu0 6
    %501 = vperm.xlu0 %500, %v44
    %v502 = vpop.permute.xlu0 %501
    %504 = vset.pattern.permute.xlu0 6
    %505 = vperm.xlu0 %504, %v45
    %v506 = vpop.permute.xlu0 %505
    %508 = vset.pattern.permute.xlu0 6
    %509 = vperm.xlu0 %508, %v46
    %v510 = vpop.permute.xlu0 %509
    %512 = vset.pattern.permute.xlu0 6
    %513 = vperm.xlu0 %512, %v47
    %v514 = vpop.permute.xlu0 %513
    %v516 = vmul.f32 %v492, %v502
    %v517 = vmul.f32 %v493, %v502
    %v518 = vmul.f32 %v494, %v506
    %v519 = vmul.f32 %v495, %v506
    %v520 = vmul.f32 %v496, %v510
    %v521 = vmul.f32 %v497, %v510
    %v522 = vmul.f32 %v498, %v514
    %v523 = vmul.f32 %v499, %v514
    %v524 = vadd.f32 %v451, %v516
    %v525 = vadd.f32 %v452, %v517
    %v526 = vadd.f32 %v453, %v518
    %v527 = vadd.f32 %v454, %v519
    %v528 = vadd.f32 %v455, %v520
    %v529 = vadd.f32 %v456, %v521
    %v530 = vadd.f32 %v457, %v522
    %v531 = vadd.f32 %v458, %v523
    %532 = vrot.lane.b32.xlu0 %v36, 112
    %v533 = vpop.permute.xlu0 %532
    %534 = vrot.lane.b32.xlu0 %v38, 112
    %v535 = vpop.permute.xlu0 %534
    %536 = vrot.lane.b32.xlu0 %v40, 112
    %v537 = vpop.permute.xlu0 %536
    %538 = vrot.lane.b32.xlu0 %v42, 112
    %v539 = vpop.permute.xlu0 %538
    %540 = vrot.lane.b32.xlu0 %v37, 112
    %v541 = vpop.permute.xlu0 %540
    %542 = vrot.lane.b32.xlu0 %v39, 112
    %v543 = vpop.permute.xlu0 %542
    %544 = vrot.lane.b32.xlu0 %v41, 112
    %v545 = vpop.permute.xlu0 %544
    %546 = vrot.lane.b32.xlu0 %v43, 112
    %v547 = vpop.permute.xlu0 %546
    %vm548 = vcmp.lt.s32.totalorder %v65, 112
    %v549 = vsel %vm548, %v533, %v541
    %v550 = vsel %vm548, %v535, %v543
    %v551 = vsel %vm548, %v537, %v545
    %v552 = vsel %vm548, %v539, %v547
    %v553 = vsel %vm548, %v541, %v533
    %v554 = vsel %vm548, %v543, %v535
    %v555 = vsel %vm548, %v545, %v537
    %v556 = vsel %vm548, %v547, %v539
    %v557 = vlaneseq
    %v558 = vshrl.u32 %v557, 7
    %v559 = vsub.s32 7, %v558
    %v560 = vrot.slane %v29, %v559
    %v561 = vlaneseq
    %v562 = vshrl.u32 %v561, 7
    %v563 = vsub.s32 7, %v562
    %v564 = vrot.slane %v30, %v563
    %v565 = vmul.f32 %v549, %v560
    %v566 = vmul.f32 %v553, %v564
    %v567 = vmul.f32 %v550, %v560
    %v568 = vmul.f32 %v554, %v564
    %v569 = vmul.f32 %v551, %v560
    %v570 = vmul.f32 %v555, %v564
    %v571 = vmul.f32 %v552, %v560
    %v572 = vmul.f32 %v556, %v564
    %573 = vset.pattern.permute.xlu0 7
    %574 = vperm.xlu0 %573, %v44
    %v575 = vpop.permute.xlu0 %574
    %577 = vset.pattern.permute.xlu0 7
    %578 = vperm.xlu0 %577, %v45
    %v579 = vpop.permute.xlu0 %578
    %581 = vset.pattern.permute.xlu0 7
    %582 = vperm.xlu0 %581, %v46
    %v583 = vpop.permute.xlu0 %582
    %585 = vset.pattern.permute.xlu0 7
    %586 = vperm.xlu0 %585, %v47
    %v587 = vpop.permute.xlu0 %586
    %v589 = vmul.f32 %v565, %v575
    %v590 = vmul.f32 %v566, %v575
    %v591 = vmul.f32 %v567, %v579
    %v592 = vmul.f32 %v568, %v579
    %v593 = vmul.f32 %v569, %v583
    %v594 = vmul.f32 %v570, %v583
    %v595 = vmul.f32 %v571, %v587
    %v596 = vmul.f32 %v572, %v587
    %v597 = vadd.f32 %v524, %v589
    %v598 = vadd.f32 %v525, %v590
    %v599 = vadd.f32 %v526, %v591
    %v600 = vadd.f32 %v527, %v592
    %v601 = vadd.f32 %v528, %v593
    %v602 = vadd.f32 %v529, %v594
    %v603 = vadd.f32 %v530, %v595
    %v604 = vadd.f32 %v531, %v596
    %605 = vrot.lane.b32.xlu0 %v36, 111
    %v606 = vpop.permute.xlu0 %605
    %607 = vrot.lane.b32.xlu0 %v38, 111
    %v608 = vpop.permute.xlu0 %607
    %609 = vrot.lane.b32.xlu0 %v40, 111
    %v610 = vpop.permute.xlu0 %609
    %611 = vrot.lane.b32.xlu0 %v42, 111
    %v612 = vpop.permute.xlu0 %611
    %613 = vrot.lane.b32.xlu0 %v37, 111
    %v614 = vpop.permute.xlu0 %613
    %615 = vrot.lane.b32.xlu0 %v39, 111
    %v616 = vpop.permute.xlu0 %615
    %617 = vrot.lane.b32.xlu0 %v41, 111
    %v618 = vpop.permute.xlu0 %617
    %619 = vrot.lane.b32.xlu0 %v43, 111
    %v620 = vpop.permute.xlu0 %619
    %vm621 = vcmp.lt.s32.totalorder %v65, 111
    %v622 = vsel %vm621, %v606, %v614
    %v623 = vsel %vm621, %v608, %v616
    %v624 = vsel %vm621, %v610, %v618
    %v625 = vsel %vm621, %v612, %v620
    %v626 = vsel %vm621, %v614, %v606
    %v627 = vsel %vm621, %v616, %v608
    %v628 = vsel %vm621, %v618, %v610
    %v629 = vsel %vm621, %v620, %v612
    %v630 = vlaneseq
    %v631 = vshrl.u32 %v630, 7
    %v632 = vsub.s32 0, %v631
    %v633 = vrot.slane %v31, %v632
    %v634 = vlaneseq
    %v635 = vshrl.u32 %v634, 7
    %v636 = vsub.s32 0, %v635
    %v637 = vrot.slane %v32, %v636
    %v638 = vmul.f32 %v622, %v633
    %v639 = vmul.f32 %v626, %v637
    %v640 = vmul.f32 %v623, %v633
    %v641 = vmul.f32 %v627, %v637
    %v642 = vmul.f32 %v624, %v633
    %v643 = vmul.f32 %v628, %v637
    %v644 = vmul.f32 %v625, %v633
    %v645 = vmul.f32 %v629, %v637
    %646 = vset.pattern.permute.xlu0 8
    %647 = vperm.xlu0 %646, %v44
    %v648 = vpop.permute.xlu0 %647
    %650 = vset.pattern.permute.xlu0 8
    %651 = vperm.xlu0 %650, %v45
    %v652 = vpop.permute.xlu0 %651
    %654 = vset.pattern.permute.xlu0 8
    %655 = vperm.xlu0 %654, %v46
    %v656 = vpop.permute.xlu0 %655
    %658 = vset.pattern.permute.xlu0 8
    %659 = vperm.xlu0 %658, %v47
    %v660 = vpop.permute.xlu0 %659
    %v662 = vmul.f32 %v638, %v648
    %v663 = vmul.f32 %v639, %v648
    %v664 = vmul.f32 %v640, %v652
    %v665 = vmul.f32 %v641, %v652
    %v666 = vmul.f32 %v642, %v656
    %v667 = vmul.f32 %v643, %v656
    %v668 = vmul.f32 %v644, %v660
    %v669 = vmul.f32 %v645, %v660
    %v670 = vadd.f32 %v597, %v662
    %v671 = vadd.f32 %v598, %v663
    %v672 = vadd.f32 %v599, %v664
    %v673 = vadd.f32 %v600, %v665
    %v674 = vadd.f32 %v601, %v666
    %v675 = vadd.f32 %v602, %v667
    %v676 = vadd.f32 %v603, %v668
    %v677 = vadd.f32 %v604, %v669
    %678 = vset.pattern.permute.xlu0 9
    %679 = vperm.xlu0 %678, %v44
    %v680 = vpop.permute.xlu0 %679
    %682 = vset.pattern.permute.xlu0 9
    %683 = vperm.xlu0 %682, %v45
    %v684 = vpop.permute.xlu0 %683
    %686 = vset.pattern.permute.xlu0 9
    %687 = vperm.xlu0 %686, %v46
    %v688 = vpop.permute.xlu0 %687
    %690 = vset.pattern.permute.xlu0 9
    %691 = vperm.xlu0 %690, %v47
    %v692 = vpop.permute.xlu0 %691
    %v694 = vadd.f32 %v670, %v680
    %v695 = vadd.f32 %v671, %v680
    %v696 = vadd.f32 %v672, %v684
    %v697 = vadd.f32 %v673, %v684
    %v698 = vadd.f32 %v674, %v688
    %v699 = vadd.f32 %v675, %v688
    %v700 = vadd.f32 %v676, %v692
    %v701 = vadd.f32 %v677, %v692
    %s702 = smul.addr %s33, 8
    %s703 = scalar_lea.vmem [#allocation5], %s702
    %704 = vst [vmem:[%s703] sm:$0xff] %v694
    %705 = vst [vmem:[%s703 + $0x8] sm:$0xff] %v695
    %706 = vst [vmem:[%s703 + $0x10] sm:$0xff] %v696
    %707 = vst [vmem:[%s703 + $0x18] sm:$0xff] %v697
    %708 = vst [vmem:[%s703 + $0x20] sm:$0xff] %v698
    %709 = vst [vmem:[%s703 + $0x28] sm:$0xff] %v699
    %710 = vst [vmem:[%s703 + $0x30] sm:$0xff] %v700
    %711 = vst [vmem:[%s703 + $0x38] sm:$0xff] %v701
    %s712 = smul.u32 4, 2
    %s713 = smul.addr %s712, 8
    %s714 = scalar_lea.vmem [#allocation2], %s713
    %v715 = vld [vmem:[%s714] sm:$0xff]
    %v716 = vld [vmem:[%s714 + $0x8] sm:$0xff]
    %v717 = vld [vmem:[%s714 + $0x10] sm:$0xff]
    %v718 = vld [vmem:[%s714 + $0x18] sm:$0xff]
    %v719 = vld [vmem:[%s714 + $0x20] sm:$0xff]
    %v720 = vld [vmem:[%s714 + $0x28] sm:$0xff]
    %v721 = vld [vmem:[%s714 + $0x30] sm:$0xff]
    %v722 = vld [vmem:[%s714 + $0x38] sm:$0xff]
    %s723 = scalar_lea.vmem %s1, 32
    %v724 = vld [vmem:[%s723] sm:$0xff]
    %v725 = vld [vmem:[%s723 + $0x8] sm:$0xff]
    %v726 = vld [vmem:[%s723 + $0x10] sm:$0xff]
    %v727 = vld [vmem:[%s723 + $0x18] sm:$0xff]
    %728 = vrot.lane.b32.xlu0 %v715, 17
    %v729 = vpop.permute.xlu0 %728
    %730 = vrot.lane.b32.xlu0 %v717, 17
    %v731 = vpop.permute.xlu0 %730
    %732 = vrot.lane.b32.xlu0 %v719, 17
    %v733 = vpop.permute.xlu0 %732
    %734 = vrot.lane.b32.xlu0 %v721, 17
    %v735 = vpop.permute.xlu0 %734
    %736 = vrot.lane.b32.xlu0 %v716, 17
    %v737 = vpop.permute.xlu0 %736
    %738 = vrot.lane.b32.xlu0 %v718, 17
    %v739 = vpop.permute.xlu0 %738
    %740 = vrot.lane.b32.xlu0 %v720, 17
    %v741 = vpop.permute.xlu0 %740
    %742 = vrot.lane.b32.xlu0 %v722, 17
    %v743 = vpop.permute.xlu0 %742
    %v744 = vsel %vm66, %v729, %v737
    %v745 = vsel %vm66, %v731, %v739
    %v746 = vsel %vm66, %v733, %v741
    %v747 = vsel %vm66, %v735, %v743
    %v748 = vsel %vm66, %v737, %v729
    %v749 = vsel %vm66, %v739, %v731
    %v750 = vsel %vm66, %v741, %v733
    %v751 = vsel %vm66, %v743, %v735
    %v752 = vmul.f32 %v748, %v78
    %v753 = vmul.f32 %v744, %v82
    %v754 = vmul.f32 %v749, %v78
    %v755 = vmul.f32 %v745, %v82
    %v756 = vmul.f32 %v750, %v78
    %v757 = vmul.f32 %v746, %v82
    %v758 = vmul.f32 %v751, %v78
    %v759 = vmul.f32 %v747, %v82
    %761 = vset.pattern.permute.xlu0 0
    %762 = vperm.xlu0 %761, %v724
    %v763 = vpop.permute.xlu0 %762
    %766 = vset.pattern.permute.xlu0 0
    %767 = vperm.xlu0 %766, %v725
    %v768 = vpop.permute.xlu0 %767
    %771 = vset.pattern.permute.xlu0 0
    %772 = vperm.xlu0 %771, %v726
    %v773 = vpop.permute.xlu0 %772
    %776 = vset.pattern.permute.xlu0 0
    %777 = vperm.xlu0 %776, %v727
    %v778 = vpop.permute.xlu0 %777
    %v780 = vmul.f32 %v752, %v763
    %v781 = vmul.f32 %v753, %v763
    %v782 = vmul.f32 %v754, %v768
    %v783 = vmul.f32 %v755, %v768
    %v784 = vmul.f32 %v756, %v773
    %v785 = vmul.f32 %v757, %v773
    %v786 = vmul.f32 %v758, %v778
    %v787 = vmul.f32 %v759, %v778
    %788 = vrot.lane.b32.xlu0 %v715, 16
    %v789 = vpop.permute.xlu0 %788
    %790 = vrot.lane.b32.xlu0 %v717, 16
    %v791 = vpop.permute.xlu0 %790
    %792 = vrot.lane.b32.xlu0 %v719, 16
    %v793 = vpop.permute.xlu0 %792
    %794 = vrot.lane.b32.xlu0 %v721, 16
    %v795 = vpop.permute.xlu0 %794
    %796 = vrot.lane.b32.xlu0 %v716, 16
    %v797 = vpop.permute.xlu0 %796
    %798 = vrot.lane.b32.xlu0 %v718, 16
    %v799 = vpop.permute.xlu0 %798
    %800 = vrot.lane.b32.xlu0 %v720, 16
    %v801 = vpop.permute.xlu0 %800
    %802 = vrot.lane.b32.xlu0 %v722, 16
    %v803 = vpop.permute.xlu0 %802
    %v804 = vsel %vm135, %v789, %v797
    %v805 = vsel %vm135, %v791, %v799
    %v806 = vsel %vm135, %v793, %v801
    %v807 = vsel %vm135, %v795, %v803
    %v808 = vsel %vm135, %v797, %v789
    %v809 = vsel %vm135, %v799, %v791
    %v810 = vsel %vm135, %v801, %v793
    %v811 = vsel %vm135, %v803, %v795
    %v812 = vmul.f32 %v808, %v147
    %v813 = vmul.f32 %v804, %v151
    %v814 = vmul.f32 %v809, %v147
    %v815 = vmul.f32 %v805, %v151
    %v816 = vmul.f32 %v810, %v147
    %v817 = vmul.f32 %v806, %v151
    %v818 = vmul.f32 %v811, %v147
    %v819 = vmul.f32 %v807, %v151
    %820 = vset.pattern.permute.xlu0 1
    %821 = vperm.xlu0 %820, %v724
    %v822 = vpop.permute.xlu0 %821
    %824 = vset.pattern.permute.xlu0 1
    %825 = vperm.xlu0 %824, %v725
    %v826 = vpop.permute.xlu0 %825
    %828 = vset.pattern.permute.xlu0 1
    %829 = vperm.xlu0 %828, %v726
    %v830 = vpop.permute.xlu0 %829
    %832 = vset.pattern.permute.xlu0 1
    %833 = vperm.xlu0 %832, %v727
    %v834 = vpop.permute.xlu0 %833
    %v836 = vmul.f32 %v812, %v822
    %v837 = vmul.f32 %v813, %v822
    %v838 = vmul.f32 %v814, %v826
    %v839 = vmul.f32 %v815, %v826
    %v840 = vmul.f32 %v816, %v830
    %v841 = vmul.f32 %v817, %v830
    %v842 = vmul.f32 %v818, %v834
    %v843 = vmul.f32 %v819, %v834
    %v844 = vadd.f32 %v780, %v836
    %v845 = vadd.f32 %v781, %v837
    %v846 = vadd.f32 %v782, %v838
    %v847 = vadd.f32 %v783, %v839
    %v848 = vadd.f32 %v784, %v840
    %v849 = vadd.f32 %v785, %v841
    %v850 = vadd.f32 %v786, %v842
    %v851 = vadd.f32 %v787, %v843
    %852 = vrot.lane.b32.xlu0 %v715, 15
    %v853 = vpop.permute.xlu0 %852
    %854 = vrot.lane.b32.xlu0 %v717, 15
    %v855 = vpop.permute.xlu0 %854
    %856 = vrot.lane.b32.xlu0 %v719, 15
    %v857 = vpop.permute.xlu0 %856
    %858 = vrot.lane.b32.xlu0 %v721, 15
    %v859 = vpop.permute.xlu0 %858
    %860 = vrot.lane.b32.xlu0 %v716, 15
    %v861 = vpop.permute.xlu0 %860
    %862 = vrot.lane.b32.xlu0 %v718, 15
    %v863 = vpop.permute.xlu0 %862
    %864 = vrot.lane.b32.xlu0 %v720, 15
    %v865 = vpop.permute.xlu0 %864
    %866 = vrot.lane.b32.xlu0 %v722, 15
    %v867 = vpop.permute.xlu0 %866
    %v868 = vsel %vm208, %v853, %v861
    %v869 = vsel %vm208, %v855, %v863
    %v870 = vsel %vm208, %v857, %v865
    %v871 = vsel %vm208, %v859, %v867
    %v872 = vsel %vm208, %v861, %v853
    %v873 = vsel %vm208, %v863, %v855
    %v874 = vsel %vm208, %v865, %v857
    %v875 = vsel %vm208, %v867, %v859
    %v876 = vmul.f32 %v872, %v220
    %v877 = vmul.f32 %v868, %v224
    %v878 = vmul.f32 %v873, %v220
    %v879 = vmul.f32 %v869, %v224
    %v880 = vmul.f32 %v874, %v220
    %v881 = vmul.f32 %v870, %v224
    %v882 = vmul.f32 %v875, %v220
    %v883 = vmul.f32 %v871, %v224
    %884 = vset.pattern.permute.xlu0 2
    %885 = vperm.xlu0 %884, %v724
    %v886 = vpop.permute.xlu0 %885
    %888 = vset.pattern.permute.xlu0 2
    %889 = vperm.xlu0 %888, %v725
    %v890 = vpop.permute.xlu0 %889
    %892 = vset.pattern.permute.xlu0 2
    %893 = vperm.xlu0 %892, %v726
    %v894 = vpop.permute.xlu0 %893
    %896 = vset.pattern.permute.xlu0 2
    %897 = vperm.xlu0 %896, %v727
    %v898 = vpop.permute.xlu0 %897
    %v900 = vmul.f32 %v876, %v886
    %v901 = vmul.f32 %v877, %v886
    %v902 = vmul.f32 %v878, %v890
    %v903 = vmul.f32 %v879, %v890
    %v904 = vmul.f32 %v880, %v894
    %v905 = vmul.f32 %v881, %v894
    %v906 = vmul.f32 %v882, %v898
    %v907 = vmul.f32 %v883, %v898
    %v908 = vadd.f32 %v844, %v900
    %v909 = vadd.f32 %v845, %v901
    %v910 = vadd.f32 %v846, %v902
    %v911 = vadd.f32 %v847, %v903
    %v912 = vadd.f32 %v848, %v904
    %v913 = vadd.f32 %v849, %v905
    %v914 = vadd.f32 %v850, %v906
    %v915 = vadd.f32 %v851, %v907
    %916 = vrot.lane.b32.xlu0 %v715, 1
    %v917 = vpop.permute.xlu0 %916
    %918 = vrot.lane.b32.xlu0 %v717, 1
    %v919 = vpop.permute.xlu0 %918
    %920 = vrot.lane.b32.xlu0 %v719, 1
    %v921 = vpop.permute.xlu0 %920
    %922 = vrot.lane.b32.xlu0 %v721, 1
    %v923 = vpop.permute.xlu0 %922
    %924 = vrot.lane.b32.xlu0 %v716, 1
    %v925 = vpop.permute.xlu0 %924
    %926 = vrot.lane.b32.xlu0 %v718, 1
    %v927 = vpop.permute.xlu0 %926
    %928 = vrot.lane.b32.xlu0 %v720, 1
    %v929 = vpop.permute.xlu0 %928
    %930 = vrot.lane.b32.xlu0 %v722, 1
    %v931 = vpop.permute.xlu0 %930
    %v932 = vsel %vm281, %v917, %v925
    %v933 = vsel %vm281, %v919, %v927
    %v934 = vsel %vm281, %v921, %v929
    %v935 = vsel %vm281, %v923, %v931
    %v936 = vsel %vm281, %v925, %v917
    %v937 = vsel %vm281, %v927, %v919
    %v938 = vsel %vm281, %v929, %v921
    %v939 = vsel %vm281, %v931, %v923
    %v940 = vmul.f32 %v936, %v293
    %v941 = vmul.f32 %v932, %v297
    %v942 = vmul.f32 %v937, %v293
    %v943 = vmul.f32 %v933, %v297
    %v944 = vmul.f32 %v938, %v293
    %v945 = vmul.f32 %v934, %v297
    %v946 = vmul.f32 %v939, %v293
    %v947 = vmul.f32 %v935, %v297
    %948 = vset.pattern.permute.xlu0 3
    %949 = vperm.xlu0 %948, %v724
    %v950 = vpop.permute.xlu0 %949
    %952 = vset.pattern.permute.xlu0 3
    %953 = vperm.xlu0 %952, %v725
    %v954 = vpop.permute.xlu0 %953
    %956 = vset.pattern.permute.xlu0 3
    %957 = vperm.xlu0 %956, %v726
    %v958 = vpop.permute.xlu0 %957
    %960 = vset.pattern.permute.xlu0 3
    %961 = vperm.xlu0 %960, %v727
    %v962 = vpop.permute.xlu0 %961
    %v964 = vmul.f32 %v940, %v950
    %v965 = vmul.f32 %v941, %v950
    %v966 = vmul.f32 %v942, %v954
    %v967 = vmul.f32 %v943, %v954
    %v968 = vmul.f32 %v944, %v958
    %v969 = vmul.f32 %v945, %v958
    %v970 = vmul.f32 %v946, %v962
    %v971 = vmul.f32 %v947, %v962
    %v972 = vadd.f32 %v908, %v964
    %v973 = vadd.f32 %v909, %v965
    %v974 = vadd.f32 %v910, %v966
    %v975 = vadd.f32 %v911, %v967
    %v976 = vadd.f32 %v912, %v968
    %v977 = vadd.f32 %v913, %v969
    %v978 = vadd.f32 %v914, %v970
    %v979 = vadd.f32 %v915, %v971
    %v980 = vmul.f32 %v715, %v341
    %v981 = vmul.f32 %v716, %v345
    %v982 = vmul.f32 %v717, %v341
    %v983 = vmul.f32 %v718, %v345
    %v984 = vmul.f32 %v719, %v341
    %v985 = vmul.f32 %v720, %v345
    %v986 = vmul.f32 %v721, %v341
    %v987 = vmul.f32 %v722, %v345
    %988 = vset.pattern.permute.xlu0 4
    %989 = vperm.xlu0 %988, %v724
    %v990 = vpop.permute.xlu0 %989
    %992 = vset.pattern.permute.xlu0 4
    %993 = vperm.xlu0 %992, %v725
    %v994 = vpop.permute.xlu0 %993
    %996 = vset.pattern.permute.xlu0 4
    %997 = vperm.xlu0 %996, %v726
    %v998 = vpop.permute.xlu0 %997
    %1000 = vset.pattern.permute.xlu0 4
    %1001 = vperm.xlu0 %1000, %v727
    %v1002 = vpop.permute.xlu0 %1001
    %v1004 = vmul.f32 %v980, %v990
    %v1005 = vmul.f32 %v981, %v990
    %v1006 = vmul.f32 %v982, %v994
    %v1007 = vmul.f32 %v983, %v994
    %v1008 = vmul.f32 %v984, %v998
    %v1009 = vmul.f32 %v985, %v998
    %v1010 = vmul.f32 %v986, %v1002
    %v1011 = vmul.f32 %v987, %v1002
    %v1012 = vadd.f32 %v972, %v1004
    %v1013 = vadd.f32 %v973, %v1005
    %v1014 = vadd.f32 %v974, %v1006
    %v1015 = vadd.f32 %v975, %v1007
    %v1016 = vadd.f32 %v976, %v1008
    %v1017 = vadd.f32 %v977, %v1009
    %v1018 = vadd.f32 %v978, %v1010
    %v1019 = vadd.f32 %v979, %v1011
    %1020 = vrot.lane.b32.xlu0 %v715, 127
    %v1021 = vpop.permute.xlu0 %1020
    %1022 = vrot.lane.b32.xlu0 %v717, 127
    %v1023 = vpop.permute.xlu0 %1022
    %1024 = vrot.lane.b32.xlu0 %v719, 127
    %v1025 = vpop.permute.xlu0 %1024
    %1026 = vrot.lane.b32.xlu0 %v721, 127
    %v1027 = vpop.permute.xlu0 %1026
    %1028 = vrot.lane.b32.xlu0 %v716, 127
    %v1029 = vpop.permute.xlu0 %1028
    %1030 = vrot.lane.b32.xlu0 %v718, 127
    %v1031 = vpop.permute.xlu0 %1030
    %1032 = vrot.lane.b32.xlu0 %v720, 127
    %v1033 = vpop.permute.xlu0 %1032
    %1034 = vrot.lane.b32.xlu0 %v722, 127
    %v1035 = vpop.permute.xlu0 %1034
    %v1036 = vsel %vm402, %v1021, %v1029
    %v1037 = vsel %vm402, %v1023, %v1031
    %v1038 = vsel %vm402, %v1025, %v1033
    %v1039 = vsel %vm402, %v1027, %v1035
    %v1040 = vsel %vm402, %v1029, %v1021
    %v1041 = vsel %vm402, %v1031, %v1023
    %v1042 = vsel %vm402, %v1033, %v1025
    %v1043 = vsel %vm402, %v1035, %v1027
    %v1044 = vmul.f32 %v1036, %v414
    %v1045 = vmul.f32 %v1040, %v418
    %v1046 = vmul.f32 %v1037, %v414
    %v1047 = vmul.f32 %v1041, %v418
    %v1048 = vmul.f32 %v1038, %v414
    %v1049 = vmul.f32 %v1042, %v418
    %v1050 = vmul.f32 %v1039, %v414
    %v1051 = vmul.f32 %v1043, %v418
    %1052 = vset.pattern.permute.xlu0 5
    %1053 = vperm.xlu0 %1052, %v724
    %v1054 = vpop.permute.xlu0 %1053
    %1056 = vset.pattern.permute.xlu0 5
    %1057 = vperm.xlu0 %1056, %v725
    %v1058 = vpop.permute.xlu0 %1057
    %1060 = vset.pattern.permute.xlu0 5
    %1061 = vperm.xlu0 %1060, %v726
    %v1062 = vpop.permute.xlu0 %1061
    %1064 = vset.pattern.permute.xlu0 5
    %1065 = vperm.xlu0 %1064, %v727
    %v1066 = vpop.permute.xlu0 %1065
    %v1068 = vmul.f32 %v1044, %v1054
    %v1069 = vmul.f32 %v1045, %v1054
    %v1070 = vmul.f32 %v1046, %v1058
    %v1071 = vmul.f32 %v1047, %v1058
    %v1072 = vmul.f32 %v1048, %v1062
    %v1073 = vmul.f32 %v1049, %v1062
    %v1074 = vmul.f32 %v1050, %v1066
    %v1075 = vmul.f32 %v1051, %v1066
    %v1076 = vadd.f32 %v1012, %v1068
    %v1077 = vadd.f32 %v1013, %v1069
    %v1078 = vadd.f32 %v1014, %v1070
    %v1079 = vadd.f32 %v1015, %v1071
    %v1080 = vadd.f32 %v1016, %v1072
    %v1081 = vadd.f32 %v1017, %v1073
    %v1082 = vadd.f32 %v1018, %v1074
    %v1083 = vadd.f32 %v1019, %v1075
    %1084 = vrot.lane.b32.xlu0 %v715, 113
    %v1085 = vpop.permute.xlu0 %1084
    %1086 = vrot.lane.b32.xlu0 %v717, 113
    %v1087 = vpop.permute.xlu0 %1086
    %1088 = vrot.lane.b32.xlu0 %v719, 113
    %v1089 = vpop.permute.xlu0 %1088
    %1090 = vrot.lane.b32.xlu0 %v721, 113
    %v1091 = vpop.permute.xlu0 %1090
    %1092 = vrot.lane.b32.xlu0 %v716, 113
    %v1093 = vpop.permute.xlu0 %1092
    %1094 = vrot.lane.b32.xlu0 %v718, 113
    %v1095 = vpop.permute.xlu0 %1094
    %1096 = vrot.lane.b32.xlu0 %v720, 113
    %v1097 = vpop.permute.xlu0 %1096
    %1098 = vrot.lane.b32.xlu0 %v722, 113
    %v1099 = vpop.permute.xlu0 %1098
    %v1100 = vsel %vm475, %v1085, %v1093
    %v1101 = vsel %vm475, %v1087, %v1095
    %v1102 = vsel %vm475, %v1089, %v1097
    %v1103 = vsel %vm475, %v1091, %v1099
    %v1104 = vsel %vm475, %v1093, %v1085
    %v1105 = vsel %vm475, %v1095, %v1087
    %v1106 = vsel %vm475, %v1097, %v1089
    %v1107 = vsel %vm475, %v1099, %v1091
    %v1108 = vmul.f32 %v1100, %v487
    %v1109 = vmul.f32 %v1104, %v491
    %v1110 = vmul.f32 %v1101, %v487
    %v1111 = vmul.f32 %v1105, %v491
    %v1112 = vmul.f32 %v1102, %v487
    %v1113 = vmul.f32 %v1106, %v491
    %v1114 = vmul.f32 %v1103, %v487
    %v1115 = vmul.f32 %v1107, %v491
    %1116 = vset.pattern.permute.xlu0 6
    %1117 = vperm.xlu0 %1116, %v724
    %v1118 = vpop.permute.xlu0 %1117
    %1120 = vset.pattern.permute.xlu0 6
    %1121 = vperm.xlu0 %1120, %v725
    %v1122 = vpop.permute.xlu0 %1121
    %1124 = vset.pattern.permute.xlu0 6
    %1125 = vperm.xlu0 %1124, %v726
    %v1126 = vpop.permute.xlu0 %1125
    %1128 = vset.pattern.permute.xlu0 6
    %1129 = vperm.xlu0 %1128, %v727
    %v1130 = vpop.permute.xlu0 %1129
    %v1132 = vmul.f32 %v1108, %v1118
    %v1133 = vmul.f32 %v1109, %v1118
    %v1134 = vmul.f32 %v1110, %v1122
    %v1135 = vmul.f32 %v1111, %v1122
    %v1136 = vmul.f32 %v1112, %v1126
    %v1137 = vmul.f32 %v1113, %v1126
    %v1138 = vmul.f32 %v1114, %v1130
    %v1139 = vmul.f32 %v1115, %v1130
    %v1140 = vadd.f32 %v1076, %v1132
    %v1141 = vadd.f32 %v1077, %v1133
    %v1142 = vadd.f32 %v1078, %v1134
    %v1143 = vadd.f32 %v1079, %v1135
    %v1144 = vadd.f32 %v1080, %v1136
    %v1145 = vadd.f32 %v1081, %v1137
    %v1146 = vadd.f32 %v1082, %v1138
    %v1147 = vadd.f32 %v1083, %v1139
    %1148 = vrot.lane.b32.xlu0 %v715, 112
    %v1149 = vpop.permute.xlu0 %1148
    %1150 = vrot.lane.b32.xlu0 %v717, 112
    %v1151 = vpop.permute.xlu0 %1150
    %1152 = vrot.lane.b32.xlu0 %v719, 112
    %v1153 = vpop.permute.xlu0 %1152
    %1154 = vrot.lane.b32.xlu0 %v721, 112
    %v1155 = vpop.permute.xlu0 %1154
    %1156 = vrot.lane.b32.xlu0 %v716, 112
    %v1157 = vpop.permute.xlu0 %1156
    %1158 = vrot.lane.b32.xlu0 %v718, 112
    %v1159 = vpop.permute.xlu0 %1158
    %1160 = vrot.lane.b32.xlu0 %v720, 112
    %v1161 = vpop.permute.xlu0 %1160
    %1162 = vrot.lane.b32.xlu0 %v722, 112
    %v1163 = vpop.permute.xlu0 %1162
    %v1164 = vsel %vm548, %v1149, %v1157
    %v1165 = vsel %vm548, %v1151, %v1159
    %v1166 = vsel %vm548, %v1153, %v1161
    %v1167 = vsel %vm548, %v1155, %v1163
    %v1168 = vsel %vm548, %v1157, %v1149
    %v1169 = vsel %vm548, %v1159, %v1151
    %v1170 = vsel %vm548, %v1161, %v1153
    %v1171 = vsel %vm548, %v1163, %v1155
    %v1172 = vmul.f32 %v1164, %v560
    %v1173 = vmul.f32 %v1168, %v564
    %v1174 = vmul.f32 %v1165, %v560
    %v1175 = vmul.f32 %v1169, %v564
    %v1176 = vmul.f32 %v1166, %v560
    %v1177 = vmul.f32 %v1170, %v564
    %v1178 = vmul.f32 %v1167, %v560
    %v1179 = vmul.f32 %v1171, %v564
    %1180 = vset.pattern.permute.xlu0 7
    %1181 = vperm.xlu0 %1180, %v724
    %v1182 = vpop.permute.xlu0 %1181
    %1184 = vset.pattern.permute.xlu0 7
    %1185 = vperm.xlu0 %1184, %v725
    %v1186 = vpop.permute.xlu0 %1185
    %1188 = vset.pattern.permute.xlu0 7
    %1189 = vperm.xlu0 %1188, %v726
    %v1190 = vpop.permute.xlu0 %1189
    %1192 = vset.pattern.permute.xlu0 7
    %1193 = vperm.xlu0 %1192, %v727
    %v1194 = vpop.permute.xlu0 %1193
    %v1196 = vmul.f32 %v1172, %v1182
    %v1197 = vmul.f32 %v1173, %v1182
    %v1198 = vmul.f32 %v1174, %v1186
    %v1199 = vmul.f32 %v1175, %v1186
    %v1200 = vmul.f32 %v1176, %v1190
    %v1201 = vmul.f32 %v1177, %v1190
    %v1202 = vmul.f32 %v1178, %v1194
    %v1203 = vmul.f32 %v1179, %v1194
    %v1204 = vadd.f32 %v1140, %v1196
    %v1205 = vadd.f32 %v1141, %v1197
    %v1206 = vadd.f32 %v1142, %v1198
    %v1207 = vadd.f32 %v1143, %v1199
    %v1208 = vadd.f32 %v1144, %v1200
    %v1209 = vadd.f32 %v1145, %v1201
    %v1210 = vadd.f32 %v1146, %v1202
    %v1211 = vadd.f32 %v1147, %v1203
    %1212 = vrot.lane.b32.xlu0 %v715, 111
    %v1213 = vpop.permute.xlu0 %1212
    %1214 = vrot.lane.b32.xlu0 %v717, 111
    %v1215 = vpop.permute.xlu0 %1214
    %1216 = vrot.lane.b32.xlu0 %v719, 111
    %v1217 = vpop.permute.xlu0 %1216
    %1218 = vrot.lane.b32.xlu0 %v721, 111
    %v1219 = vpop.permute.xlu0 %1218
    %1220 = vrot.lane.b32.xlu0 %v716, 111
    %v1221 = vpop.permute.xlu0 %1220
    %1222 = vrot.lane.b32.xlu0 %v718, 111
    %v1223 = vpop.permute.xlu0 %1222
    %1224 = vrot.lane.b32.xlu0 %v720, 111
    %v1225 = vpop.permute.xlu0 %1224
    %1226 = vrot.lane.b32.xlu0 %v722, 111
    %v1227 = vpop.permute.xlu0 %1226
    %v1228 = vsel %vm621, %v1213, %v1221
    %v1229 = vsel %vm621, %v1215, %v1223
    %v1230 = vsel %vm621, %v1217, %v1225
    %v1231 = vsel %vm621, %v1219, %v1227
    %v1232 = vsel %vm621, %v1221, %v1213
    %v1233 = vsel %vm621, %v1223, %v1215
    %v1234 = vsel %vm621, %v1225, %v1217
    %v1235 = vsel %vm621, %v1227, %v1219
    %v1236 = vmul.f32 %v1228, %v633
    %v1237 = vmul.f32 %v1232, %v637
    %v1238 = vmul.f32 %v1229, %v633
    %v1239 = vmul.f32 %v1233, %v637
    %v1240 = vmul.f32 %v1230, %v633
    %v1241 = vmul.f32 %v1234, %v637
    %v1242 = vmul.f32 %v1231, %v633
    %v1243 = vmul.f32 %v1235, %v637
    %1244 = vset.pattern.permute.xlu0 8
    %1245 = vperm.xlu0 %1244, %v724
    %v1246 = vpop.permute.xlu0 %1245
    %1248 = vset.pattern.permute.xlu0 8
    %1249 = vperm.xlu0 %1248, %v725
    %v1250 = vpop.permute.xlu0 %1249
    %1252 = vset.pattern.permute.xlu0 8
    %1253 = vperm.xlu0 %1252, %v726
    %v1254 = vpop.permute.xlu0 %1253
    %1256 = vset.pattern.permute.xlu0 8
    %1257 = vperm.xlu0 %1256, %v727
    %v1258 = vpop.permute.xlu0 %1257
    %v1260 = vmul.f32 %v1236, %v1246
    %v1261 = vmul.f32 %v1237, %v1246
    %v1262 = vmul.f32 %v1238, %v1250
    %v1263 = vmul.f32 %v1239, %v1250
    %v1264 = vmul.f32 %v1240, %v1254
    %v1265 = vmul.f32 %v1241, %v1254
    %v1266 = vmul.f32 %v1242, %v1258
    %v1267 = vmul.f32 %v1243, %v1258
    %v1268 = vadd.f32 %v1204, %v1260
    %v1269 = vadd.f32 %v1205, %v1261
    %v1270 = vadd.f32 %v1206, %v1262
    %v1271 = vadd.f32 %v1207, %v1263
    %v1272 = vadd.f32 %v1208, %v1264
    %v1273 = vadd.f32 %v1209, %v1265
    %v1274 = vadd.f32 %v1210, %v1266
    %v1275 = vadd.f32 %v1211, %v1267
    %1276 = vset.pattern.permute.xlu0 9
    %1277 = vperm.xlu0 %1276, %v724
    %v1278 = vpop.permute.xlu0 %1277
    %1280 = vset.pattern.permute.xlu0 9
    %1281 = vperm.xlu0 %1280, %v725
    %v1282 = vpop.permute.xlu0 %1281
    %1284 = vset.pattern.permute.xlu0 9
    %1285 = vperm.xlu0 %1284, %v726
    %v1286 = vpop.permute.xlu0 %1285
    %1288 = vset.pattern.permute.xlu0 9
    %1289 = vperm.xlu0 %1288, %v727
    %v1290 = vpop.permute.xlu0 %1289
    %v1292 = vadd.f32 %v1268, %v1278
    %v1293 = vadd.f32 %v1269, %v1278
    %v1294 = vadd.f32 %v1270, %v1282
    %v1295 = vadd.f32 %v1271, %v1282
    %v1296 = vadd.f32 %v1272, %v1286
    %v1297 = vadd.f32 %v1273, %v1286
    %v1298 = vadd.f32 %v1274, %v1290
    %v1299 = vadd.f32 %v1275, %v1290
    %s1300 = smul.addr %s712, 8
    %s1301 = scalar_lea.vmem [#allocation5], %s1300
    %1302 = vst [vmem:[%s1301] sm:$0xff] %v1292
    %1303 = vst [vmem:[%s1301 + $0x8] sm:$0xff] %v1293
    %1304 = vst [vmem:[%s1301 + $0x10] sm:$0xff] %v1294
    %1305 = vst [vmem:[%s1301 + $0x18] sm:$0xff] %v1295
    %1306 = vst [vmem:[%s1301 + $0x20] sm:$0xff] %v1296
    %1307 = vst [vmem:[%s1301 + $0x28] sm:$0xff] %v1297
    %1308 = vst [vmem:[%s1301 + $0x30] sm:$0xff] %v1298
    %1309 = vst [vmem:[%s1301 + $0x38] sm:$0xff] %v1299
    // Predicated region
    $region18: #{tpu_custom_call.1} parent=1 // pred_check
      _
    $region19: #{tpu_custom_call.1} parent=1 // pred_check_branch
      %1311 = sbr.rel (0) target = $region21
    $region20: #{tpu_custom_call.1} parent=1 // pred_region
      %s1313 = ssub.s32 2048, 2048
      %1314 = vsyncadd [#allocation4], %s1313
      %s1315 = sshll.u32 [#allocation5], 4
      %s1316 = int_to_ptr.vmem [resolvable:$true] %s1315
      %1321 = dma.vmem_to_hbm [thread:$0]  %s1316, 2048, %s3, [#allocation4], 256, 256, 16
    $region21: #{tpu_custom_call.1} parent=1 // pred_fallthru
      _
    // Predicated region
    $region22: #{tpu_custom_call.1} parent=1 // pred_check
      _
    $region23: #{tpu_custom_call.1} parent=1 // pred_check_branch
      %1323 = sbr.rel (0) target = $region25
    $region24: #{tpu_custom_call.1} parent=1 // pred_region
      %1324 = dma.done [#allocation4], 2048
    $region25: #{tpu_custom_call.1} parent=1 // pred_fallthru
      _
    %1325 = vsyncpa [#allocation3], 1
    %1326 = vsyncpa [#allocation4], 1

</llo_original>
